<compile_context>
chip_gen: v5e
topology: v5e:2x2
jax: 0.10.0
libtpu: 0.0.40
codegen_flags: <defaults>
</compile_context>

<pallas_src>
import functools

import jax
import jax.numpy as jnp
from jax.experimental import pallas as pl
from jax.experimental.pallas import tpu as pltpu


TM = 128  # token rows per grid step (sublane/lane aligned tile)


def _round_up(x, m):
    return (x + m - 1) // m * m


def _gather_rows(idx_tile, table):
    """Exact embedding-row gather for a (TM,1) index tile via one-hot matmul."""
    tm = idx_tile.shape[0]
    vp = table.shape[1]
    col = jax.lax.broadcasted_iota(jnp.int32, (tm, vp), 1)
    onehot = (col == idx_tile).astype(jnp.float32)            # (TM, Vp)
    rows = jnp.dot(onehot, table, preferred_element_type=jnp.float32)
    return rows, col


def _train_kernel(idx_ref, tgt_ref, table_ref, logits_ref, loss_ref, acc_ref,
                  *, bt, v_valid):
    """Gather a TM-row tile of logits + fused cross-entropy partial sum."""
    i = pl.program_id(0)
    tm = idx_ref.shape[0]

    @pl.when(i == 0)
    def _():
        acc_ref[...] = jnp.zeros_like(acc_ref)

    logits, col = _gather_rows(idx_ref[...], table_ref[...])
    logits_ref[...] = logits                                  # (TM, Vp) dense store

    # loss_r = logsumexp(logits_r[:V]) - logits_r[target_r]
    masked = jnp.where(col < v_valid, logits, -jnp.inf)
    m = jnp.max(masked, axis=-1, keepdims=True)
    lse = jnp.log(jnp.sum(jnp.exp(masked - m), axis=-1, keepdims=True)) + m
    picked = jnp.sum(jnp.where(col == tgt_ref[...], logits, 0.0),
                     axis=-1, keepdims=True)

    # Mask rows past the true B*T (row padding of the last tile).
    row = jax.lax.broadcasted_iota(jnp.int32, (tm, 1), 0) + i * tm
    per_row = jnp.where(row < bt, lse - picked, 0.0)
    acc_ref[...] += jnp.sum(per_row, keepdims=True)

    @pl.when(i == pl.num_programs(0) - 1)
    def _():
        loss_ref[...] = acc_ref[...] * (1.0 / bt)


def _infer_kernel(idx_ref, table_ref, logits_ref):
    """Inference path: pure row gather, no softmax / no targets."""
    logits, _ = _gather_rows(idx_ref[...], table_ref[...])
    logits_ref[...] = logits


@functools.partial(jax.jit, static_argnames=("bt", "v"))
def _bigram_train(idx_p, tgt_p, table_p, *, bt, v):
    btp = idx_p.shape[0]
    vp = table_p.shape[1]

    kernel = functools.partial(_train_kernel, bt=bt, v_valid=v)
    logits_p, loss = pl.pallas_call(
        kernel,
        out_shape=(
            jax.ShapeDtypeStruct((btp, vp), jnp.float32),
            jax.ShapeDtypeStruct((1, 1), jnp.float32),
        ),
        grid_spec=pltpu.PrefetchScalarGridSpec(
            num_scalar_prefetch=0,
            grid=(btp // TM,),
            in_specs=[
                pl.BlockSpec((TM, 1), lambda i: (i, 0)),     # token ids
                pl.BlockSpec((TM, 1), lambda i: (i, 0)),     # targets
                pl.BlockSpec((vp, vp), lambda i: (0, 0)),    # table, VMEM-resident
            ],
            out_specs=[
                pl.BlockSpec((TM, vp), lambda i: (i, 0)),    # logits
                pl.BlockSpec((1, 1), lambda i: (0, 0)),      # scalar loss
            ],
            scratch_shapes=[pltpu.VMEM((1, 1), jnp.float32)],  # loss sum carry
        ),
        compiler_params=pltpu.CompilerParams(
            dimension_semantics=("arbitrary",)),   # carries loss accumulator
    )(idx_p, tgt_p, table_p)
    return logits_p, loss


@jax.jit
def _bigram_infer(idx_p, table_p):
    btp = idx_p.shape[0]
    vp = table_p.shape[1]

    return pl.pallas_call(
        _infer_kernel,
        out_shape=jax.ShapeDtypeStruct((btp, vp), jnp.float32),
        grid_spec=pltpu.PrefetchScalarGridSpec(
            num_scalar_prefetch=0,
            grid=(btp // TM,),
            in_specs=[
                pl.BlockSpec((TM, 1), lambda i: (i, 0)),
                pl.BlockSpec((vp, vp), lambda i: (0, 0)),
            ],
            out_specs=pl.BlockSpec((TM, vp), lambda i: (i, 0)),
        ),
        compiler_params=pltpu.CompilerParams(
            dimension_semantics=("parallel",)),    # no carried state
    )(idx_p, table_p)


def bigram_forward(indx, table, targets=None):
    """Mirrors BigramLanguageModel.forward(indx, targets)."""
    B, T = indx.shape
    V = table.shape[0]
    BT = B * T
    Vp = _round_up(V, 128)       # lane-dense vocab padding
    BTp = _round_up(BT, TM)      # tile-aligned row padding

    # TODO(synk): for very large vocabularies (Vp*Vp*4 bytes > VMEM) the table
    # would need row-tiling; char-level bigram vocabs (~65) are far below that.
    table_p = jnp.pad(table.astype(jnp.float32), ((0, Vp - V), (0, Vp - V)))
    idx_p = jnp.pad(indx.reshape(BT).astype(jnp.int32),
                    (0, BTp - BT)).reshape(BTp, 1)

    if targets is None:
        logits_p = _bigram_infer(idx_p, table_p)
        # PyTorch returns (B, T, C) logits and loss=None.
        return logits_p[:BT, :V].reshape(B, T, V), None

    tgt_p = jnp.pad(targets.reshape(BT).astype(jnp.int32),
                    (0, BTp - BT)).reshape(BTp, 1)
    logits_p, loss = _bigram_train(idx_p, tgt_p, table_p, bt=BT, v=V)
    # PyTorch returns flattened (B*T, C) logits and a scalar loss.
    return logits_p[:BT, :V], loss[0, 0]


if __name__ == "__main__":
    # Small synthetic setup: vocab of 65 chars (Shakespeare-like), batch=2, seq=8.
    vocab_size = 65
    B, T = 2, 8

    key = jax.random.PRNGKey(0)
    k_tab, k_idx, k_tgt = jax.random.split(key, 3)

    # nn.Embedding default init: N(0, 1).
    table = jax.random.normal(k_tab, (vocab_size, vocab_size), dtype=jnp.float32)
    indx = jax.random.randint(k_idx, (B, T), 0, vocab_size, dtype=jnp.int32)
    targets = jax.random.randint(k_tgt, (B, T), 0, vocab_size, dtype=jnp.int32)

    # Training path: flattened logits + scalar loss.
    logits, loss = bigram_forward(indx, table, targets)
    logits = jax.block_until_ready(logits)
    loss = jax.block_until_ready(loss)

    # Inference path: (B, T, V) logits, loss None, no softmax work in kernel.
    logits_nt, loss_nt = bigram_forward(indx, table, None)
    logits_nt = jax.block_until_ready(logits_nt)

    # Pure-JAX reference check.
    ref_logits = table[indx.reshape(-1)]
    ref_lse = jax.scipy.special.logsumexp(ref_logits, axis=-1)
    ref_picked = jnp.take_along_axis(
        ref_logits, targets.reshape(-1, 1), axis=-1)[:, 0]
    ref_loss = jnp.mean(ref_lse - ref_picked)

    assert logits.shape == (B * T, vocab_size)
    assert logits_nt.shape == (B, T, vocab_size)
    assert loss_nt is None
    assert jnp.allclose(logits, ref_logits, atol=1e-5)
    assert jnp.allclose(logits_nt.reshape(B * T, vocab_size), ref_logits, atol=1e-5)
    assert jnp.allclose(loss, ref_loss, atol=1e-5)

    # TODO(synk): generate() is an autoregressive host-side torch.multinomial
    # sampling loop, not a kernel hot path, so it is omitted.

    print("KERNEL_OK")
</pallas_src>

<mosaic_0001>
module attributes {stable_mosaic.version = 11 : i64} {
  func.func @_train_kernel(%arg0: i32, %arg1: memref<128x1xi32, #tpu.memory_space<vmem>>, %arg2: memref<128x1xi32, #tpu.memory_space<vmem>>, %arg3: memref<128x128xf32, #tpu.memory_space<vmem>>, %arg4: memref<128x128xf32, #tpu.memory_space<vmem>>, %arg5: memref<1x1xf32, #tpu.memory_space<vmem>>, %arg6: memref<1x1xf32, #tpu.memory_space<vmem>>) attributes {dimension_semantics = [#tpu.dimension_semantics<arbitrary>], iteration_bounds = array<i64: 1>, scalar_prefetch = 0 : i64, scratch_operands = 1 : i64, tpu.core_type = #tpu.core_type<tc>, window_params = [{transform_indices = @transform_0, window_bounds = array<i64: 128, 1>}, {transform_indices = @transform_1, window_bounds = array<i64: 128, 1>}, {pipeline_mode = #tpu.pipeline_mode<synchronous>, transform_indices = @transform_2, window_bounds = array<i64: 128, 128>}, {transform_indices = @transform_3, window_bounds = array<i64: 128, 128>}, {pipeline_mode = #tpu.pipeline_mode<synchronous>, transform_indices = @transform_4, window_bounds = array<i64: 1, 1>}]} {
    %c0_i32 = arith.constant 0 : i32
    %0 = arith.cmpi eq, %arg0, %c0_i32 : i32
    %1 = arith.extui %0 : i1 to i32
    %c0_i32_0 = arith.constant 0 : i32
    %2 = arith.cmpi ne, %1, %c0_i32_0 : i32
    scf.if %2 {
      %cst_21 = arith.constant 0.000000e+00 : f32
      %52 = vector.broadcast %cst_21 : f32 to vector<1x1xf32>
      %c0_22 = arith.constant 0 : index
      %c0_23 = arith.constant 0 : index
      %53 = vector.load %arg6[%c0_22, %c0_23] : memref<1x1xf32, #tpu.memory_space<vmem>>, vector<1x1xf32>
      tpu.vector_store %arg6[%c0_22, %c0_23], %52 {strides = array<i32>} : memref<1x1xf32, #tpu.memory_space<vmem>>, vector<1x1xf32>,
    } else {
    }
    %c0 = arith.constant 0 : index
    %c0_1 = arith.constant 0 : index
    %3 = vector.load %arg1[%c0, %c0_1] : memref<128x1xi32, #tpu.memory_space<vmem>>, vector<128x1xi32>
    %c0_2 = arith.constant 0 : index
    %c0_3 = arith.constant 0 : index
    %4 = vector.load %arg3[%c0_2, %c0_3] : memref<128x128xf32, #tpu.memory_space<vmem>>, vector<128x128xf32>
    %5 = tpu.iota {dimensions = array<i32: 1>} : vector<128x128xi32>
    %6 = vector.broadcast %3 : vector<128x1xi32> to vector<128x128xi32>
    %7 = arith.cmpi eq, %5, %6 : vector<128x128xi32>
    %8 = arith.extui %7 : vector<128x128xi1> to vector<128x128xi32>
    %9 = arith.sitofp %8 : vector<128x128xi32> to vector<128x128xf32>
    %cst = arith.constant dense<0.000000e+00> : vector<128x128xf32>
    %10 = tpu.matmul %9, %4, %cst {dimension_numbers = #tpu.dot_dimension_numbers<[1], [0], [0], [1], [0, 0, 1, 1], [], []>} : vector<128x128xf32>, vector<128x128xf32>, vector<128x128xf32> -> vector<128x128xf32>
    %c0_4 = arith.constant 0 : index
    %c0_5 = arith.constant 0 : index
    %11 = vector.load %arg4[%c0_4, %c0_5] : memref<128x128xf32, #tpu.memory_space<vmem>>, vector<128x128xf32>
    tpu.vector_store %arg4[%c0_4, %c0_5], %10 {strides = array<i32>} : memref<128x128xf32, #tpu.memory_space<vmem>>, vector<128x128xf32>,
    %c65_i32 = arith.constant 65 : i32
    %12 = vector.broadcast %c65_i32 : i32 to vector<128x128xi32>
    %13 = arith.cmpi slt, %5, %12 : vector<128x128xi32>
    %cst_6 = arith.constant 0xFF800000 : f32
    %14 = vector.broadcast %cst_6 : f32 to vector<128x128xf32>
    %15 = arith.select %13, %10, %14 : vector<128x128xi1>, vector<128x128xf32>
    %cst_7 = arith.constant dense<0xFF800000> : vector<128xf32>
    %16 = vector.multi_reduction <maximumf>, %15, %cst_7 [1] : vector<128x128xf32> to vector<128xf32>
    %17 = vector.shape_cast %16 : vector<128xf32> to vector<128x1xf32>
    %18 = vector.broadcast %17 : vector<128x1xf32> to vector<128x128xf32>
    %19 = arith.subf %15, %18 : vector<128x128xf32>
    %20 = math.exp %19 : vector<128x128xf32>
    %cst_8 = arith.constant dense<0.000000e+00> : vector<128xf32>
    %21 = vector.multi_reduction <add>, %20, %cst_8 [1] : vector<128x128xf32> to vector<128xf32>
    %22 = vector.shape_cast %21 : vector<128xf32> to vector<128x1xf32>
    %23 = math.log %22 : vector<128x1xf32>
    %24 = arith.addf %23, %17 : vector<128x1xf32>
    %c0_9 = arith.constant 0 : index
    %c0_10 = arith.constant 0 : index
    %25 = vector.load %arg2[%c0_9, %c0_10] : memref<128x1xi32, #tpu.memory_space<vmem>>, vector<128x1xi32>
    %26 = vector.broadcast %25 : vector<128x1xi32> to vector<128x128xi32>
    %27 = arith.cmpi eq, %5, %26 : vector<128x128xi32>
    %cst_11 = arith.constant 0.000000e+00 : f32
    %28 = vector.broadcast %cst_11 : f32 to vector<128x128xf32>
    %29 = arith.select %27, %10, %28 : vector<128x128xi1>, vector<128x128xf32>
    %cst_12 = arith.constant dense<0.000000e+00> : vector<128xf32>
    %30 = vector.multi_reduction <add>, %29, %cst_12 [1] : vector<128x128xf32> to vector<128xf32>
    %31 = vector.shape_cast %30 : vector<128xf32> to vector<128x1xf32>
    %32 = tpu.iota {dimensions = array<i32: 0>} : vector<128x1xi32>
    %c128_i32 = arith.constant 128 : i32
    %33 = arith.muli %arg0, %c128_i32 : i32
    %34 = vector.broadcast %33 : i32 to vector<128x1xi32>
    %35 = arith.addi %32, %34 : vector<128x1xi32>
    %c16_i32 = arith.constant 16 : i32
    %36 = vector.broadcast %c16_i32 : i32 to vector<128x1xi32>
    %37 = arith.cmpi slt, %35, %36 : vector<128x1xi32>
    %38 = arith.subf %24, %31 : vector<128x1xf32>
    %cst_13 = arith.constant 0.000000e+00 : f32
    %39 = vector.broadcast %cst_13 : f32 to vector<128x1xf32>
    %40 = arith.select %37, %38, %39 : vector<128x1xi1>, vector<128x1xf32>
    %c0_14 = arith.constant 0 : index
    %c0_15 = arith.constant 0 : index
    %41 = vector.load %arg6[%c0_14, %c0_15] : memref<1x1xf32, #tpu.memory_space<vmem>>, vector<1x1xf32>
    %42 = vector.shape_cast %40 : vector<128x1xf32> to vector<1x128x1xf32>
    %cst_16 = arith.constant dense<0.000000e+00> : vector<1xf32>
    %43 = vector.multi_reduction <add>, %42, %cst_16 [1, 2] : vector<1x128x1xf32> to vector<1xf32>
    %44 = vector.shape_cast %43 : vector<1xf32> to vector<1x1x1xf32>
    %45 = vector.extract %44[0, 0, 0] : f32 from vector<1x1x1xf32>
    %46 = vector.broadcast %45 : f32 to vector<1x1xf32>
    %47 = arith.addf %41, %46 : vector<1x1xf32>
    %c0_17 = arith.constant 0 : index
    %c0_18 = arith.constant 0 : index
    %48 = vector.load %arg6[%c0_17, %c0_18] : memref<1x1xf32, #tpu.memory_space<vmem>>, vector<1x1xf32>
    tpu.vector_store %arg6[%c0_17, %c0_18], %47 {strides = array<i32>} : memref<1x1xf32, #tpu.memory_space<vmem>>, vector<1x1xf32>,
    %c0_i32_19 = arith.constant 0 : i32
    %49 = arith.cmpi eq, %arg0, %c0_i32_19 : i32
    %50 = arith.extui %49 : i1 to i32
    %c0_i32_20 = arith.constant 0 : i32
    %51 = arith.cmpi ne, %50, %c0_i32_20 : i32
    scf.if %51 {
      %c0_21 = arith.constant 0 : index
      %c0_22 = arith.constant 0 : index
      %52 = vector.load %arg6[%c0_21, %c0_22] : memref<1x1xf32, #tpu.memory_space<vmem>>, vector<1x1xf32>
      %cst_23 = arith.constant 6.250000e-02 : f32
      %53 = vector.broadcast %cst_23 : f32 to vector<1x1xf32>
      %54 = arith.mulf %52, %53 : vector<1x1xf32>
      %c0_24 = arith.constant 0 : index
      %c0_25 = arith.constant 0 : index
      %55 = vector.load %arg5[%c0_24, %c0_25] : memref<1x1xf32, #tpu.memory_space<vmem>>, vector<1x1xf32>
      tpu.vector_store %arg5[%c0_24, %c0_25], %54 {strides = array<i32>} : memref<1x1xf32, #tpu.memory_space<vmem>>, vector<1x1xf32>,
    } else {
    }
    return
  }
  func.func @transform_0(%arg0: i32) -> (i32, i32) {
    %c0_i32 = arith.constant 0 : i32
    %c0_i32_0 = arith.constant 0 : i32
    return %arg0, %c0_i32 : i32, i32
  }
  func.func @transform_1(%arg0: i32) -> (i32, i32) {
    %c0_i32 = arith.constant 0 : i32
    %c0_i32_0 = arith.constant 0 : i32
    return %arg0, %c0_i32 : i32, i32
  }
  func.func @transform_2(%arg0: i32) -> (i32, i32) {
    %c0_i32 = arith.constant 0 : i32
    %c0_i32_0 = arith.constant 0 : i32
    %c0_i32_1 = arith.constant 0 : i32
    return %c0_i32, %c0_i32_0 : i32, i32
  }
  func.func @transform_3(%arg0: i32) -> (i32, i32) {
    %c0_i32 = arith.constant 0 : i32
    %c0_i32_0 = arith.constant 0 : i32
    return %arg0, %c0_i32 : i32, i32
  }
  func.func @transform_4(%arg0: i32) -> (i32, i32) {
    %c0_i32 = arith.constant 0 : i32
    %c0_i32_0 = arith.constant 0 : i32
    %c0_i32_1 = arith.constant 0 : i32
    return %c0_i32, %c0_i32_0 : i32, i32
  }
}

</mosaic_0001>

<llo_original>
// kernel: _bigram_train.1
$region0: #{_bigram_train.1}
  #allocation0 [shape = 'u32[]', space=smem, size = 0x4, offset = 0x4, fixed_abs, tag = 'smem constant byte address 0x4 - core index']
  #allocation1 [shape = 'u32[72,128]{1,0:T(1,128)}', space=vmem, size = 0x9000, scoped, tag = 'internal scratch']
  #allocation2 [shape = 'f32[1,1]{1,0:T(1,128)}', space=vmem, size = 0x200, scoped, tag = 'scratch operand']
  %s0 = inlined_call_operand.vmem [shape: s32[128,1], index: 0, kind: input, shape index: {}]
  %s1 = inlined_call_operand.vmem [shape: s32[128,1], index: 1, kind: input, shape index: {}]
  %s2 = inlined_call_operand.vmem [shape: f32[128,128], index: 2, kind: input, shape index: {}]
  %s3 = inlined_call_operand.hbm [shape: f32[128,128], index: 3, kind: output, shape index: {0}]
  %s4 = inlined_call_operand.hbm [shape: f32[1,1], index: 4, kind: output, shape index: {1}]
  %5 = xla_tuple %s3, %s4
  %s6 = sld [smem:[#allocation0]]
  $region38: #{_bigram_train.1} parent=0
    _
  %s8 = ssub.s32 1, %s6
  %s9 = scalar_select 0, %s8, %s6
  $region1: #{_bigram_train.1} parent=0
    #allocation3 [shape = 'u8[65536]{0}', space=vmem, size = 0x10000, scoped, tag = 'output window, operand 0, single buffered']
    #allocation4 [shape = 's32[1]{0}', space=sflag, size = 0x4, scoped, tag = 'scoped memory for _bigram_train.1']
    #allocation5 [shape = 'u8[512]{0}', space=vmem, size = 0x400, scoped, tag = 'output window, operand 1, single buffered']
    #allocation6 [shape = 's32[1]{0}', space=sflag, size = 0x4, scoped, tag = 'scoped memory for _bigram_train.1']
    %10 = vsyncpa [#allocation4], 0
    %11 = vsyncpa [#allocation6], 0
    // Predicated region
    $region2: #{_bigram_train.1} parent=1 // pred_check
      _
    $region3: #{_bigram_train.1} parent=1 // pred_check_branch
      %13 = sbr.rel (0) target = $region5
    $region4: #{_bigram_train.1} parent=1 // pred_region
      _
    $region5: #{_bigram_train.1} parent=1 // pred_fallthru
      _
    // Predicated region
    $region6: #{_bigram_train.1} parent=1 // pred_check
      _
    $region7: #{_bigram_train.1} parent=1 // pred_check_branch
      %15 = sbr.rel (0) target = $region9
    $region8: #{_bigram_train.1} parent=1 // pred_region
      _
    $region9: #{_bigram_train.1} parent=1 // pred_fallthru
      _
    // Predicated region
    $region10: #{_bigram_train.1} parent=1 // pred_check
      _
    $region11: #{_bigram_train.1} parent=1 // pred_check_branch
      %17 = sbr.rel (0) target = $region13
    $region12: #{_bigram_train.1} parent=1 // pred_region
      _
    $region13: #{_bigram_train.1} parent=1 // pred_fallthru
      _
    %p18 = scmp.eq.s32.totalorder 0, 0
    // Predicated region
    $region14: #{_bigram_train.1} parent=1 // pred_check
      %p19 = pneg %p18
    $region15: #{_bigram_train.1} parent=1 // pred_check_branch
      %21 = sbr.rel (%p19) target = $region17
    $region16: #{_bigram_train.1} parent=1 // pred_region
      %vm22 = vcmask 0
      %23 = vst.msk [vmem:[#allocation2] sm:$0x1] %vm22, 0.0
    $region17: #{_bigram_train.1} parent=1 // pred_fallthru
      _
    %v24 = vld [vmem:[%s0] sm:$0xff]
    %v25 = vld [vmem:[%s0 + $0x8] sm:$0xff]
    %v26 = vld [vmem:[%s0 + $0x10] sm:$0xff]
    %v27 = vld [vmem:[%s0 + $0x18] sm:$0xff]
    %v28 = vld [vmem:[%s0 + $0x20] sm:$0xff]
    %v29 = vld [vmem:[%s0 + $0x28] sm:$0xff]
    %v30 = vld [vmem:[%s0 + $0x30] sm:$0xff]
    %v31 = vld [vmem:[%s0 + $0x38] sm:$0xff]
    %v32 = vld [vmem:[%s0 + $0x40] sm:$0xff]
    %v33 = vld [vmem:[%s0 + $0x48] sm:$0xff]
    %v34 = vld [vmem:[%s0 + $0x50] sm:$0xff]
    %v35 = vld [vmem:[%s0 + $0x58] sm:$0xff]
    %v36 = vld [vmem:[%s0 + $0x60] sm:$0xff]
    %v37 = vld [vmem:[%s0 + $0x68] sm:$0xff]
    %v38 = vld [vmem:[%s0 + $0x70] sm:$0xff]
    %v39 = vld [vmem:[%s0 + $0x78] sm:$0xff]
    %v40 = vld [vmem:[%s2] sm:$0xff]
    %v41 = vld [vmem:[%s2 + $0x8] sm:$0xff]
    %v42 = vld [vmem:[%s2 + $0x10] sm:$0xff]
    %v43 = vld [vmem:[%s2 + $0x18] sm:$0xff]
    %v44 = vld [vmem:[%s2 + $0x20] sm:$0xff]
    %v45 = vld [vmem:[%s2 + $0x28] sm:$0xff]
    %v46 = vld [vmem:[%s2 + $0x30] sm:$0xff]
    %v47 = vld [vmem:[%s2 + $0x38] sm:$0xff]
    %v48 = vld [vmem:[%s2 + $0x40] sm:$0xff]
    %v49 = vld [vmem:[%s2 + $0x48] sm:$0xff]
    %v50 = vld [vmem:[%s2 + $0x50] sm:$0xff]
    %v51 = vld [vmem:[%s2 + $0x58] sm:$0xff]
    %v52 = vld [vmem:[%s2 + $0x60] sm:$0xff]
    %v53 = vld [vmem:[%s2 + $0x68] sm:$0xff]
    %v54 = vld [vmem:[%s2 + $0x70] sm:$0xff]
    %v55 = vld [vmem:[%s2 + $0x78] sm:$0xff]
    %v56 = vlaneseq
    %v57 = vand.u32 %v56, 127
    %58 = vset.pattern.permute.xlu0 0
    %59 = vperm.xlu0 %58, %v24
    %v60 = vpop.permute.xlu0 %59
    %61 = vset.pattern.permute.xlu0 0
    %62 = vperm.xlu0 %61, %v25
    %v63 = vpop.permute.xlu0 %62
    %64 = vset.pattern.permute.xlu0 0
    %65 = vperm.xlu0 %64, %v26
    %v66 = vpop.permute.xlu0 %65
    %67 = vset.pattern.permute.xlu0 0
    %68 = vperm.xlu0 %67, %v27
    %v69 = vpop.permute.xlu0 %68
    %70 = vset.pattern.permute.xlu0 0
    %71 = vperm.xlu0 %70, %v28
    %v72 = vpop.permute.xlu0 %71
    %73 = vset.pattern.permute.xlu0 0
    %74 = vperm.xlu0 %73, %v29
    %v75 = vpop.permute.xlu0 %74
    %76 = vset.pattern.permute.xlu0 0
    %77 = vperm.xlu0 %76, %v30
    %v78 = vpop.permute.xlu0 %77
    %79 = vset.pattern.permute.xlu0 0
    %80 = vperm.xlu0 %79, %v31
    %v81 = vpop.permute.xlu0 %80
    %82 = vset.pattern.permute.xlu0 0
    %83 = vperm.xlu0 %82, %v32
    %v84 = vpop.permute.xlu0 %83
    %85 = vset.pattern.permute.xlu0 0
    %86 = vperm.xlu0 %85, %v33
    %v87 = vpop.permute.xlu0 %86
    %88 = vset.pattern.permute.xlu0 0
    %89 = vperm.xlu0 %88, %v34
    %v90 = vpop.permute.xlu0 %89
    %91 = vset.pattern.permute.xlu0 0
    %92 = vperm.xlu0 %91, %v35
    %v93 = vpop.permute.xlu0 %92
    %94 = vset.pattern.permute.xlu0 0
    %95 = vperm.xlu0 %94, %v36
    %v96 = vpop.permute.xlu0 %95
    %97 = vset.pattern.permute.xlu0 0
    %98 = vperm.xlu0 %97, %v37
    %v99 = vpop.permute.xlu0 %98
    %100 = vset.pattern.permute.xlu0 0
    %101 = vperm.xlu0 %100, %v38
    %v102 = vpop.permute.xlu0 %101
    %103 = vset.pattern.permute.xlu0 0
    %104 = vperm.xlu0 %103, %v39
    %v105 = vpop.permute.xlu0 %104
    %vm106 = vcmp.eq.s32.totalorder %v57, %v60
    %vm107 = vcmp.eq.s32.totalorder %v57, %v63
    %vm108 = vcmp.eq.s32.totalorder %v57, %v66
    %vm109 = vcmp.eq.s32.totalorder %v57, %v69
    %vm110 = vcmp.eq.s32.totalorder %v57, %v72
    %vm111 = vcmp.eq.s32.totalorder %v57, %v75
    %vm112 = vcmp.eq.s32.totalorder %v57, %v78
    %vm113 = vcmp.eq.s32.totalorder %v57, %v81
    %vm114 = vcmp.eq.s32.totalorder %v57, %v84
    %vm115 = vcmp.eq.s32.totalorder %v57, %v87
    %vm116 = vcmp.eq.s32.totalorder %v57, %v90
    %vm117 = vcmp.eq.s32.totalorder %v57, %v93
    %vm118 = vcmp.eq.s32.totalorder %v57, %v96
    %vm119 = vcmp.eq.s32.totalorder %v57, %v99
    %vm120 = vcmp.eq.s32.totalorder %v57, %v102
    %vm121 = vcmp.eq.s32.totalorder %v57, %v105
    %v122 = vsel %vm106, 1, 0
    %v123 = vsel %vm107, 1, 0
    %v124 = vsel %vm108, 1, 0
    %v125 = vsel %vm109, 1, 0
    %v126 = vsel %vm110, 1, 0
    %v127 = vsel %vm111, 1, 0
    %v128 = vsel %vm112, 1, 0
    %v129 = vsel %vm113, 1, 0
    %v130 = vsel %vm114, 1, 0
    %v131 = vsel %vm115, 1, 0
    %v132 = vsel %vm116, 1, 0
    %v133 = vsel %vm117, 1, 0
    %v134 = vsel %vm118, 1, 0
    %v135 = vsel %vm119, 1, 0
    %v136 = vsel %vm120, 1, 0
    %v137 = vsel %vm121, 1, 0
    %v138 = vcvt.s32.f32 %v122
    %v139 = vcvt.s32.f32 %v123
    %v140 = vcvt.s32.f32 %v124
    %v141 = vcvt.s32.f32 %v125
    %v142 = vcvt.s32.f32 %v126
    %v143 = vcvt.s32.f32 %v127
    %v144 = vcvt.s32.f32 %v128
    %v145 = vcvt.s32.f32 %v129
    %v146 = vcvt.s32.f32 %v130
    %v147 = vcvt.s32.f32 %v131
    %v148 = vcvt.s32.f32 %v132
    %v149 = vcvt.s32.f32 %v133
    %v150 = vcvt.s32.f32 %v134
    %v151 = vcvt.s32.f32 %v135
    %v152 = vcvt.s32.f32 %v136
    %v153 = vcvt.s32.f32 %v137
    %154 = vmatpush.msra.mxu0 %v55
    %155 = vmatpush.msra.mxu0 %v54
    %156 = vmatpush.msra.mxu0 %v53
    %157 = vmatpush.msra.mxu0 %v52
    %158 = vmatpush.msra.mxu0 %v51
    %159 = vmatpush.msra.mxu0 %v50
    %160 = vmatpush.msra.mxu0 %v49
    %161 = vmatpush.msra.mxu0 %v48
    %162 = vmatpush.msra.mxu0 %v47
    %163 = vmatpush.msra.mxu0 %v46
    %164 = vmatpush.msra.mxu0 %v45
    %165 = vmatpush.msra.mxu0 %v44
    %166 = vmatpush.msra.mxu0 %v43
    %167 = vmatpush.msra.mxu0 %v42
    %168 = vmatpush.msra.mxu0 %v41
    %169 = vmatpush.msra.mxu0 %v40
    %170 = vmatmul.f32.gmra.mxu0 %v138
    %v171 = vpop.f32.mrf.mxu0
    %v172 = vadd.f32 0.0, %v171
    %173 = vmatmul.f32.gmra.mxu0 %v139
    %v174 = vpop.f32.mrf.mxu0
    %v175 = vadd.f32 0.0, %v174
    %176 = vmatmul.f32.gmra.mxu0 %v140
    %v177 = vpop.f32.mrf.mxu0
    %v178 = vadd.f32 0.0, %v177
    %179 = vmatmul.f32.gmra.mxu0 %v141
    %v180 = vpop.f32.mrf.mxu0
    %v181 = vadd.f32 0.0, %v180
    %182 = vmatmul.f32.gmra.mxu0 %v142
    %v183 = vpop.f32.mrf.mxu0
    %v184 = vadd.f32 0.0, %v183
    %185 = vmatmul.f32.gmra.mxu0 %v143
    %v186 = vpop.f32.mrf.mxu0
    %v187 = vadd.f32 0.0, %v186
    %188 = vmatmul.f32.gmra.mxu0 %v144
    %v189 = vpop.f32.mrf.mxu0
    %v190 = vadd.f32 0.0, %v189
    %191 = vmatmul.f32.gmra.mxu0 %v145
    %v192 = vpop.f32.mrf.mxu0
    %v193 = vadd.f32 0.0, %v192
    %194 = vmatmul.f32.gmra.mxu0 %v146
    %v195 = vpop.f32.mrf.mxu0
    %v196 = vadd.f32 0.0, %v195
    %197 = vmatmul.f32.gmra.mxu0 %v147
    %v198 = vpop.f32.mrf.mxu0
    %v199 = vadd.f32 0.0, %v198
    %200 = vmatmul.f32.gmra.mxu0 %v148
    %v201 = vpop.f32.mrf.mxu0
    %v202 = vadd.f32 0.0, %v201
    %203 = vmatmul.f32.gmra.mxu0 %v149
    %v204 = vpop.f32.mrf.mxu0
    %v205 = vadd.f32 0.0, %v204
    %206 = vmatmul.f32.gmra.mxu0 %v150
    %v207 = vpop.f32.mrf.mxu0
    %v208 = vadd.f32 0.0, %v207
    %209 = vmatmul.f32.gmra.mxu0 %v151
    %v210 = vpop.f32.mrf.mxu0
    %v211 = vadd.f32 0.0, %v210
    %212 = vmatmul.f32.gmra.mxu0 %v152
    %v213 = vpop.f32.mrf.mxu0
    %v214 = vadd.f32 0.0, %v213
    %215 = vmatmul.f32.gmra.mxu0 %v153
    %v216 = vpop.f32.mrf.mxu0
    %v217 = vadd.f32 0.0, %v216
    %218 = vdwg.mxu0
    %219 = vst [vmem:[#allocation3] sm:$0xff] %v172
    %220 = vst [vmem:[#allocation3 + $0x8] sm:$0xff] %v175
    %221 = vst [vmem:[#allocation3 + $0x10] sm:$0xff] %v178
    %222 = vst [vmem:[#allocation3 + $0x18] sm:$0xff] %v181
    %223 = vst [vmem:[#allocation3 + $0x20] sm:$0xff] %v184
    %224 = vst [vmem:[#allocation3 + $0x28] sm:$0xff] %v187
    %225 = vst [vmem:[#allocation3 + $0x30] sm:$0xff] %v190
    %226 = vst [vmem:[#allocation3 + $0x38] sm:$0xff] %v193
    %227 = vst [vmem:[#allocation3 + $0x40] sm:$0xff] %v196
    %228 = vst [vmem:[#allocation3 + $0x48] sm:$0xff] %v199
    %229 = vst [vmem:[#allocation3 + $0x50] sm:$0xff] %v202
    %230 = vst [vmem:[#allocation3 + $0x58] sm:$0xff] %v205
    %231 = vst [vmem:[#allocation3 + $0x60] sm:$0xff] %v208
    %232 = vst [vmem:[#allocation3 + $0x68] sm:$0xff] %v211
    %233 = vst [vmem:[#allocation3 + $0x70] sm:$0xff] %v214
    %234 = vst [vmem:[#allocation3 + $0x78] sm:$0xff] %v217
    %vm235 = vcmp.lt.s32.totalorder %v57, 65
    %v236 = vsel %vm235, %v172, -inf
    %v237 = vsel %vm235, %v175, -inf
    %v238 = vsel %vm235, %v178, -inf
    %v239 = vsel %vm235, %v181, -inf
    %v240 = vsel %vm235, %v184, -inf
    %v241 = vsel %vm235, %v187, -inf
    %v242 = vsel %vm235, %v190, -inf
    %v243 = vsel %vm235, %v193, -inf
    %v244 = vsel %vm235, %v196, -inf
    %v245 = vsel %vm235, %v199, -inf
    %v246 = vsel %vm235, %v202, -inf
    %v247 = vsel %vm235, %v205, -inf
    %v248 = vsel %vm235, %v208, -inf
    %v249 = vsel %vm235, %v211, -inf
    %v250 = vsel %vm235, %v214, -inf
    %v251 = vsel %vm235, %v217, -inf
    %252 = vmax.xlane.f32.xlu0 %v236
    %v253 = vpop.xlane.xlu0 %252
    %254 = vmax.xlane.f32.xlu0 %v237
    %v255 = vpop.xlane.xlu0 %254
    %256 = vmax.xlane.f32.xlu0 %v238
    %v257 = vpop.xlane.xlu0 %256
    %258 = vmax.xlane.f32.xlu0 %v239
    %v259 = vpop.xlane.xlu0 %258
    %260 = vmax.xlane.f32.xlu0 %v240
    %v261 = vpop.xlane.xlu0 %260
    %262 = vmax.xlane.f32.xlu0 %v241
    %v263 = vpop.xlane.xlu0 %262
    %264 = vmax.xlane.f32.xlu0 %v242
    %v265 = vpop.xlane.xlu0 %264
    %266 = vmax.xlane.f32.xlu0 %v243
    %v267 = vpop.xlane.xlu0 %266
    %268 = vmax.xlane.f32.xlu0 %v244
    %v269 = vpop.xlane.xlu0 %268
    %270 = vmax.xlane.f32.xlu0 %v245
    %v271 = vpop.xlane.xlu0 %270
    %272 = vmax.xlane.f32.xlu0 %v246
    %v273 = vpop.xlane.xlu0 %272
    %274 = vmax.xlane.f32.xlu0 %v247
    %v275 = vpop.xlane.xlu0 %274
    %276 = vmax.xlane.f32.xlu0 %v248
    %v277 = vpop.xlane.xlu0 %276
    %278 = vmax.xlane.f32.xlu0 %v249
    %v279 = vpop.xlane.xlu0 %278
    %280 = vmax.xlane.f32.xlu0 %v250
    %v281 = vpop.xlane.xlu0 %280
    %282 = vmax.xlane.f32.xlu0 %v251
    %v283 = vpop.xlane.xlu0 %282
    %v284 = vsub.f32 %v236, %v253
    %v285 = vsub.f32 %v237, %v255
    %v286 = vsub.f32 %v238, %v257
    %v287 = vsub.f32 %v239, %v259
    %v288 = vsub.f32 %v240, %v261
    %v289 = vsub.f32 %v241, %v263
    %v290 = vsub.f32 %v242, %v265
    %v291 = vsub.f32 %v243, %v267
    %v292 = vsub.f32 %v244, %v269
    %v293 = vsub.f32 %v245, %v271
    %v294 = vsub.f32 %v246, %v273
    %v295 = vsub.f32 %v247, %v275
    %v296 = vsub.f32 %v248, %v277
    %v297 = vsub.f32 %v249, %v279
    %v298 = vsub.f32 %v250, %v281
    %v299 = vsub.f32 %v251, %v283
    %v300 = vmul.f32 %v284, 1.442695
    %v301 = vpow.pop %v300
    %v302 = vmul.f32 %v285, 1.442695
    %v303 = vpow.pop %v302
    %v304 = vmul.f32 %v286, 1.442695
    %v305 = vpow.pop %v304
    %v306 = vmul.f32 %v287, 1.442695
    %v307 = vpow.pop %v306
    %v308 = vmul.f32 %v288, 1.442695
    %v309 = vpow.pop %v308
    %v310 = vmul.f32 %v289, 1.442695
    %v311 = vpow.pop %v310
    %v312 = vmul.f32 %v290, 1.442695
    %v313 = vpow.pop %v312
    %v314 = vmul.f32 %v291, 1.442695
    %v315 = vpow.pop %v314
    %v316 = vmul.f32 %v292, 1.442695
    %v317 = vpow.pop %v316
    %v318 = vmul.f32 %v293, 1.442695
    %v319 = vpow.pop %v318
    %v320 = vmul.f32 %v294, 1.442695
    %v321 = vpow.pop %v320
    %v322 = vmul.f32 %v295, 1.442695
    %v323 = vpow.pop %v322
    %v324 = vmul.f32 %v296, 1.442695
    %v325 = vpow.pop %v324
    %v326 = vmul.f32 %v297, 1.442695
    %v327 = vpow.pop %v326
    %v328 = vmul.f32 %v298, 1.442695
    %v329 = vpow.pop %v328
    %v330 = vmul.f32 %v299, 1.442695
    %v331 = vpow.pop %v330
    %332 = vadd.xlane.f32.xlu0 %v301
    %v333 = vpop.xlane.xlu0 %332
    %334 = vadd.xlane.f32.xlu0 %v303
    %v335 = vpop.xlane.xlu0 %334
    %336 = vadd.xlane.f32.xlu0 %v305
    %v337 = vpop.xlane.xlu0 %336
    %338 = vadd.xlane.f32.xlu0 %v307
    %v339 = vpop.xlane.xlu0 %338
    %340 = vadd.xlane.f32.xlu0 %v309
    %v341 = vpop.xlane.xlu0 %340
    %342 = vadd.xlane.f32.xlu0 %v311
    %v343 = vpop.xlane.xlu0 %342
    %344 = vadd.xlane.f32.xlu0 %v313
    %v345 = vpop.xlane.xlu0 %344
    %346 = vadd.xlane.f32.xlu0 %v315
    %v347 = vpop.xlane.xlu0 %346
    %348 = vadd.xlane.f32.xlu0 %v317
    %v349 = vpop.xlane.xlu0 %348
    %350 = vadd.xlane.f32.xlu0 %v319
    %v351 = vpop.xlane.xlu0 %350
    %352 = vadd.xlane.f32.xlu0 %v321
    %v353 = vpop.xlane.xlu0 %352
    %354 = vadd.xlane.f32.xlu0 %v323
    %v355 = vpop.xlane.xlu0 %354
    %356 = vadd.xlane.f32.xlu0 %v325
    %v357 = vpop.xlane.xlu0 %356
    %358 = vadd.xlane.f32.xlu0 %v327
    %v359 = vpop.xlane.xlu0 %358
    %360 = vadd.xlane.f32.xlu0 %v329
    %v361 = vpop.xlane.xlu0 %360
    %362 = vadd.xlane.f32.xlu0 %v331
    %v363 = vpop.xlane.xlu0 %362
    %v364 = vlog2.pop %v333
    %v365 = vmul.f32 %v364, 0.6931472
    %v366 = vlog2.pop %v335
    %v367 = vmul.f32 %v366, 0.6931472
    %v368 = vlog2.pop %v337
    %v369 = vmul.f32 %v368, 0.6931472
    %v370 = vlog2.pop %v339
    %v371 = vmul.f32 %v370, 0.6931472
    %v372 = vlog2.pop %v341
    %v373 = vmul.f32 %v372, 0.6931472
    %v374 = vlog2.pop %v343
    %v375 = vmul.f32 %v374, 0.6931472
    %v376 = vlog2.pop %v345
    %v377 = vmul.f32 %v376, 0.6931472
    %v378 = vlog2.pop %v347
    %v379 = vmul.f32 %v378, 0.6931472
    %v380 = vlog2.pop %v349
    %v381 = vmul.f32 %v380, 0.6931472
    %v382 = vlog2.pop %v351
    %v383 = vmul.f32 %v382, 0.6931472
    %v384 = vlog2.pop %v353
    %v385 = vmul.f32 %v384, 0.6931472
    %v386 = vlog2.pop %v355
    %v387 = vmul.f32 %v386, 0.6931472
    %v388 = vlog2.pop %v357
    %v389 = vmul.f32 %v388, 0.6931472
    %v390 = vlog2.pop %v359
    %v391 = vmul.f32 %v390, 0.6931472
    %v392 = vlog2.pop %v361
    %v393 = vmul.f32 %v392, 0.6931472
    %v394 = vlog2.pop %v363
    %v395 = vmul.f32 %v394, 0.6931472
    %v396 = vadd.f32 %v365, %v253
    %v397 = vadd.f32 %v367, %v255
    %v398 = vadd.f32 %v369, %v257
    %v399 = vadd.f32 %v371, %v259
    %v400 = vadd.f32 %v373, %v261
    %v401 = vadd.f32 %v375, %v263
    %v402 = vadd.f32 %v377, %v265
    %v403 = vadd.f32 %v379, %v267
    %v404 = vadd.f32 %v381, %v269
    %v405 = vadd.f32 %v383, %v271
    %v406 = vadd.f32 %v385, %v273
    %v407 = vadd.f32 %v387, %v275
    %v408 = vadd.f32 %v389, %v277
    %v409 = vadd.f32 %v391, %v279
    %v410 = vadd.f32 %v393, %v281
    %v411 = vadd.f32 %v395, %v283
    %v412 = vld [vmem:[%s1] sm:$0xff]
    %v413 = vld [vmem:[%s1 + $0x8] sm:$0xff]
    %v414 = vld [vmem:[%s1 + $0x10] sm:$0xff]
    %v415 = vld [vmem:[%s1 + $0x18] sm:$0xff]
    %v416 = vld [vmem:[%s1 + $0x20] sm:$0xff]
    %v417 = vld [vmem:[%s1 + $0x28] sm:$0xff]
    %v418 = vld [vmem:[%s1 + $0x30] sm:$0xff]
    %v419 = vld [vmem:[%s1 + $0x38] sm:$0xff]
    %v420 = vld [vmem:[%s1 + $0x40] sm:$0xff]
    %v421 = vld [vmem:[%s1 + $0x48] sm:$0xff]
    %v422 = vld [vmem:[%s1 + $0x50] sm:$0xff]
    %v423 = vld [vmem:[%s1 + $0x58] sm:$0xff]
    %v424 = vld [vmem:[%s1 + $0x60] sm:$0xff]
    %v425 = vld [vmem:[%s1 + $0x68] sm:$0xff]
    %v426 = vld [vmem:[%s1 + $0x70] sm:$0xff]
    %v427 = vld [vmem:[%s1 + $0x78] sm:$0xff]
    %428 = vset.pattern.permute.xlu0 0
    %429 = vperm.xlu0 %428, %v412
    %v430 = vpop.permute.xlu0 %429
    %431 = vset.pattern.permute.xlu0 0
    %432 = vperm.xlu0 %431, %v413
    %v433 = vpop.permute.xlu0 %432
    %434 = vset.pattern.permute.xlu0 0
    %435 = vperm.xlu0 %434, %v414
    %v436 = vpop.permute.xlu0 %435
    %437 = vset.pattern.permute.xlu0 0
    %438 = vperm.xlu0 %437, %v415
    %v439 = vpop.permute.xlu0 %438
    %440 = vset.pattern.permute.xlu0 0
    %441 = vperm.xlu0 %440, %v416
    %v442 = vpop.permute.xlu0 %441
    %443 = vset.pattern.permute.xlu0 0
    %444 = vperm.xlu0 %443, %v417
    %v445 = vpop.permute.xlu0 %444
    %446 = vset.pattern.permute.xlu0 0
    %447 = vperm.xlu0 %446, %v418
    %v448 = vpop.permute.xlu0 %447
    %449 = vset.pattern.permute.xlu0 0
    %450 = vperm.xlu0 %449, %v419
    %v451 = vpop.permute.xlu0 %450
    %452 = vset.pattern.permute.xlu0 0
    %453 = vperm.xlu0 %452, %v420
    %v454 = vpop.permute.xlu0 %453
    %455 = vset.pattern.permute.xlu0 0
    %456 = vperm.xlu0 %455, %v421
    %v457 = vpop.permute.xlu0 %456
    %458 = vset.pattern.permute.xlu0 0
    %459 = vperm.xlu0 %458, %v422
    %v460 = vpop.permute.xlu0 %459
    %461 = vset.pattern.permute.xlu0 0
    %462 = vperm.xlu0 %461, %v423
    %v463 = vpop.permute.xlu0 %462
    %464 = vset.pattern.permute.xlu0 0
    %465 = vperm.xlu0 %464, %v424
    %v466 = vpop.permute.xlu0 %465
    %467 = vset.pattern.permute.xlu0 0
    %468 = vperm.xlu0 %467, %v425
    %v469 = vpop.permute.xlu0 %468
    %470 = vset.pattern.permute.xlu0 0
    %471 = vperm.xlu0 %470, %v426
    %v472 = vpop.permute.xlu0 %471
    %473 = vset.pattern.permute.xlu0 0
    %474 = vperm.xlu0 %473, %v427
    %v475 = vpop.permute.xlu0 %474
    %vm476 = vcmp.eq.s32.totalorder %v57, %v430
    %vm477 = vcmp.eq.s32.totalorder %v57, %v433
    %vm478 = vcmp.eq.s32.totalorder %v57, %v436
    %vm479 = vcmp.eq.s32.totalorder %v57, %v439
    %vm480 = vcmp.eq.s32.totalorder %v57, %v442
    %vm481 = vcmp.eq.s32.totalorder %v57, %v445
    %vm482 = vcmp.eq.s32.totalorder %v57, %v448
    %vm483 = vcmp.eq.s32.totalorder %v57, %v451
    %vm484 = vcmp.eq.s32.totalorder %v57, %v454
    %vm485 = vcmp.eq.s32.totalorder %v57, %v457
    %vm486 = vcmp.eq.s32.totalorder %v57, %v460
    %vm487 = vcmp.eq.s32.totalorder %v57, %v463
    %vm488 = vcmp.eq.s32.totalorder %v57, %v466
    %vm489 = vcmp.eq.s32.totalorder %v57, %v469
    %vm490 = vcmp.eq.s32.totalorder %v57, %v472
    %vm491 = vcmp.eq.s32.totalorder %v57, %v475
    %v492 = vsel %vm476, %v172, 0.0
    %v493 = vsel %vm477, %v175, 0.0
    %v494 = vsel %vm478, %v178, 0.0
    %v495 = vsel %vm479, %v181, 0.0
    %v496 = vsel %vm480, %v184, 0.0
    %v497 = vsel %vm481, %v187, 0.0
    %v498 = vsel %vm482, %v190, 0.0
    %v499 = vsel %vm483, %v193, 0.0
    %v500 = vsel %vm484, %v196, 0.0
    %v501 = vsel %vm485, %v199, 0.0
    %v502 = vsel %vm486, %v202, 0.0
    %v503 = vsel %vm487, %v205, 0.0
    %v504 = vsel %vm488, %v208, 0.0
    %v505 = vsel %vm489, %v211, 0.0
    %v506 = vsel %vm490, %v214, 0.0
    %v507 = vsel %vm491, %v217, 0.0
    %508 = vadd.xlane.f32.xlu0 %v492
    %v509 = vpop.xlane.xlu0 %508
    %510 = vadd.xlane.f32.xlu0 %v493
    %v511 = vpop.xlane.xlu0 %510
    %512 = vadd.xlane.f32.xlu0 %v494
    %v513 = vpop.xlane.xlu0 %512
    %514 = vadd.xlane.f32.xlu0 %v495
    %v515 = vpop.xlane.xlu0 %514
    %516 = vadd.xlane.f32.xlu0 %v496
    %v517 = vpop.xlane.xlu0 %516
    %518 = vadd.xlane.f32.xlu0 %v497
    %v519 = vpop.xlane.xlu0 %518
    %520 = vadd.xlane.f32.xlu0 %v498
    %v521 = vpop.xlane.xlu0 %520
    %522 = vadd.xlane.f32.xlu0 %v499
    %v523 = vpop.xlane.xlu0 %522
    %524 = vadd.xlane.f32.xlu0 %v500
    %v525 = vpop.xlane.xlu0 %524
    %526 = vadd.xlane.f32.xlu0 %v501
    %v527 = vpop.xlane.xlu0 %526
    %528 = vadd.xlane.f32.xlu0 %v502
    %v529 = vpop.xlane.xlu0 %528
    %530 = vadd.xlane.f32.xlu0 %v503
    %v531 = vpop.xlane.xlu0 %530
    %532 = vadd.xlane.f32.xlu0 %v504
    %v533 = vpop.xlane.xlu0 %532
    %534 = vadd.xlane.f32.xlu0 %v505
    %v535 = vpop.xlane.xlu0 %534
    %536 = vadd.xlane.f32.xlu0 %v506
    %v537 = vpop.xlane.xlu0 %536
    %538 = vadd.xlane.f32.xlu0 %v507
    %v539 = vpop.xlane.xlu0 %538
    %v540 = vlaneseq
    %v541 = vshrl.u32 %v540, 7
    %v542 = vadd.s32 %v541, 8
    %v543 = vadd.s32 %v541, 16
    %v544 = vadd.s32 %v541, 24
    %v545 = vadd.s32 %v541, 32
    %v546 = vadd.s32 %v541, 40
    %v547 = vadd.s32 %v541, 48
    %v548 = vadd.s32 %v541, 56
    %v549 = vadd.s32 %v541, 64
    %v550 = vadd.s32 %v541, 72
    %v551 = vadd.s32 %v541, 80
    %v552 = vadd.s32 %v541, 88
    %v553 = vadd.s32 %v541, 96
    %v554 = vadd.s32 %v541, 104
    %v555 = vadd.s32 %v541, 112
    %v556 = vadd.s32 %v541, 120
    %s557 = smul.u32 0, 128
    %v558 = vstv %s557
    %v559 = vadd.s32 %v541, %v558
    %v560 = vadd.s32 %v542, %v558
    %v561 = vadd.s32 %v543, %v558
    %v562 = vadd.s32 %v544, %v558
    %v563 = vadd.s32 %v545, %v558
    %v564 = vadd.s32 %v546, %v558
    %v565 = vadd.s32 %v547, %v558
    %v566 = vadd.s32 %v548, %v558
    %v567 = vadd.s32 %v549, %v558
    %v568 = vadd.s32 %v550, %v558
    %v569 = vadd.s32 %v551, %v558
    %v570 = vadd.s32 %v552, %v558
    %v571 = vadd.s32 %v553, %v558
    %v572 = vadd.s32 %v554, %v558
    %v573 = vadd.s32 %v555, %v558
    %v574 = vadd.s32 %v556, %v558
    %vm575 = vcmp.lt.s32.totalorder %v559, 16
    %vm576 = vcmp.lt.s32.totalorder %v560, 16
    %vm577 = vcmp.lt.s32.totalorder %v561, 16
    %vm578 = vcmp.lt.s32.totalorder %v562, 16
    %vm579 = vcmp.lt.s32.totalorder %v563, 16
    %vm580 = vcmp.lt.s32.totalorder %v564, 16
    %vm581 = vcmp.lt.s32.totalorder %v565, 16
    %vm582 = vcmp.lt.s32.totalorder %v566, 16
    %vm583 = vcmp.lt.s32.totalorder %v567, 16
    %vm584 = vcmp.lt.s32.totalorder %v568, 16
    %vm585 = vcmp.lt.s32.totalorder %v569, 16
    %vm586 = vcmp.lt.s32.totalorder %v570, 16
    %vm587 = vcmp.lt.s32.totalorder %v571, 16
    %vm588 = vcmp.lt.s32.totalorder %v572, 16
    %vm589 = vcmp.lt.s32.totalorder %v573, 16
    %vm590 = vcmp.lt.s32.totalorder %v574, 16
    %v591 = vsub.f32 %v396, %v509
    %v592 = vsub.f32 %v397, %v511
    %v593 = vsub.f32 %v398, %v513
    %v594 = vsub.f32 %v399, %v515
    %v595 = vsub.f32 %v400, %v517
    %v596 = vsub.f32 %v401, %v519
    %v597 = vsub.f32 %v402, %v521
    %v598 = vsub.f32 %v403, %v523
    %v599 = vsub.f32 %v404, %v525
    %v600 = vsub.f32 %v405, %v527
    %v601 = vsub.f32 %v406, %v529
    %v602 = vsub.f32 %v407, %v531
    %v603 = vsub.f32 %v408, %v533
    %v604 = vsub.f32 %v409, %v535
    %v605 = vsub.f32 %v410, %v537
    %v606 = vsub.f32 %v411, %v539
    %v607 = vsel %vm575, %v591, 0.0
    %v608 = vsel %vm576, %v592, 0.0
    %v609 = vsel %vm577, %v593, 0.0
    %v610 = vsel %vm578, %v594, 0.0
    %v611 = vsel %vm579, %v595, 0.0
    %v612 = vsel %vm580, %v596, 0.0
    %v613 = vsel %vm581, %v597, 0.0
    %v614 = vsel %vm582, %v598, 0.0
    %v615 = vsel %vm583, %v599, 0.0
    %v616 = vsel %vm584, %v600, 0.0
    %v617 = vsel %vm585, %v601, 0.0
    %v618 = vsel %vm586, %v602, 0.0
    %v619 = vsel %vm587, %v603, 0.0
    %v620 = vsel %vm588, %v604, 0.0
    %v621 = vsel %vm589, %v605, 0.0
    %v622 = vsel %vm590, %v606, 0.0
    %v623 = vld [vmem:[#allocation2] sm:$0x1]
    %vm624 = vcmask 7168
    %v625 = vsel %vm624, %v607, 0.0
    %v626 = vsel %vm624, %v608, 0.0
    %v627 = vadd.f32 %v625, %v626
    %v628 = vsel %vm624, %v609, 0.0
    %v629 = vadd.f32 %v627, %v628
    %v630 = vsel %vm624, %v610, 0.0
    %v631 = vadd.f32 %v629, %v630
    %v632 = vsel %vm624, %v611, 0.0
    %v633 = vadd.f32 %v631, %v632
    %v634 = vsel %vm624, %v612, 0.0
    %v635 = vadd.f32 %v633, %v634
    %v636 = vsel %vm624, %v613, 0.0
    %v637 = vadd.f32 %v635, %v636
    %v638 = vsel %vm624, %v614, 0.0
    %v639 = vadd.f32 %v637, %v638
    %v640 = vsel %vm624, %v615, 0.0
    %v641 = vadd.f32 %v639, %v640
    %v642 = vsel %vm624, %v616, 0.0
    %v643 = vadd.f32 %v641, %v642
    %v644 = vsel %vm624, %v617, 0.0
    %v645 = vadd.f32 %v643, %v644
    %v646 = vsel %vm624, %v618, 0.0
    %v647 = vadd.f32 %v645, %v646
    %v648 = vsel %vm624, %v619, 0.0
    %v649 = vadd.f32 %v647, %v648
    %v650 = vsel %vm624, %v620, 0.0
    %v651 = vadd.f32 %v649, %v650
    %v652 = vsel %vm624, %v621, 0.0
    %v653 = vadd.f32 %v651, %v652
    %v654 = vsel %vm624, %v622, 0.0
    %v655 = vadd.f32 %v653, %v654
    %656 = vadd.xlane.f32.xlu0 %v655
    %v657 = vpop.xlane.xlu0 %656
    %v658 = vrot.slane %v657, 4
    %v659 = vadd.f32 %v657, %v658
    %v660 = vrot.slane %v659, 2
    %v661 = vadd.f32 %v659, %v660
    %v662 = vrot.slane %v661, 1
    %v663 = vadd.f32 %v661, %v662
    %s664 = vtos %v663
    %v665 = vstv %s664
    %v666 = vadd.f32 %v623, %v665
    %vm667 = vcmask 0
    %668 = vst.msk [vmem:[#allocation2] sm:$0x1] %vm667, %v666
    // Predicated region
    $region18: #{_bigram_train.1} parent=1 // pred_check
      %p669 = pneg %p18
    $region19: #{_bigram_train.1} parent=1 // pred_check_branch
      %671 = sbr.rel (%p669) target = $region21
    $region20: #{_bigram_train.1} parent=1 // pred_region
      %v672 = vld [vmem:[#allocation2] sm:$0x1]
      %v673 = vmul.f32 %v672, 0.0625
      %674 = vst.msk [vmem:[#allocation5] sm:$0x1] %vm667, %v673
    $region21: #{_bigram_train.1} parent=1 // pred_fallthru
      _
    // Predicated region
    $region22: #{_bigram_train.1} parent=1 // pred_check
      _
    $region23: #{_bigram_train.1} parent=1 // pred_check_branch
      %676 = sbr.rel (0) target = $region25
    $region24: #{_bigram_train.1} parent=1 // pred_region
      %678 = vsyncadd [#allocation4], 0
      %s679 = sshll.u32 [#allocation3], 4
      %s680 = int_to_ptr.vmem [resolvable:$true] %s679
      %s681 = sshll.u32 %s3, 4
      %s682 = int_to_ptr.hbm [resolvable:$true] %s681
      %687 = dma.vmem_to_hbm [thread:$0]  %s680, 2048, %s682, [#allocation4], 128, 128, 8
    $region25: #{_bigram_train.1} parent=1 // pred_fallthru
      _
    // Predicated region
    $region26: #{_bigram_train.1} parent=1 // pred_check
      _
    $region27: #{_bigram_train.1} parent=1 // pred_check_branch
      %689 = sbr.rel (0) target = $region29
    $region28: #{_bigram_train.1} parent=1 // pred_region
      %691 = vsyncadd [#allocation6], 0
      %s693 = sshll.u32 [#allocation5], 4
      %s694 = int_to_ptr.vmem [resolvable:$true] %s693
      %s695 = sshll.u32 %s4, 4
      %s696 = int_to_ptr.hbm [resolvable:$true] %s695
      %698 = dma.vmem_to_hbm [thread:$0]  %s694, 16, %s696, [#allocation6]
    $region29: #{_bigram_train.1} parent=1 // pred_fallthru
      _
    // Predicated region
    $region30: #{_bigram_train.1} parent=1 // pred_check
      _
    $region31: #{_bigram_train.1} parent=1 // pred_check_branch
      %700 = sbr.rel (0) target = $region33
    $region32: #{_bigram_train.1} parent=1 // pred_region
      %702 = dma.done [#allocation4], 2048
    $region33: #{_bigram_train.1} parent=1 // pred_fallthru
      _
    // Predicated region
    $region34: #{_bigram_train.1} parent=1 // pred_check
      _
    $region35: #{_bigram_train.1} parent=1 // pred_check_branch
      %704 = sbr.rel (0) target = $region37
    $region36: #{_bigram_train.1} parent=1 // pred_region
      %706 = dma.done [#allocation6], 16
    $region37: #{_bigram_train.1} parent=1 // pred_fallthru
      _
    %707 = vsyncpa [#allocation4], 1
    %708 = vsyncpa [#allocation6], 1

</llo_original>
